<compile_context>
chip_gen: v5e
topology: v5e:2x2
jax: 0.10.0
libtpu: 0.0.40
codegen_flags: <defaults>
</compile_context>

<pallas_src>
import functools

import jax
import jax.numpy as jnp
from jax.experimental import pallas as pl
from jax.experimental.pallas import tpu as pltpu


# ----------------------------------------------------------------------------- utilities
def _round_up(x, m):
    return ((x + m - 1) // m) * m


def _extract_patches(x, k, stride):
    """x: (B, H, W, C) already padded.  Returns (B, oh, ow, k*k*C), taps in (kh, kw, cin) order."""
    B, H, W, C = x.shape
    oh = (H - k) // stride + 1
    ow = (W - k) // stride + 1
    cols = []
    for dh in range(k):
        for dw in range(k):
            cols.append(x[:, dh:dh + stride * (oh - 1) + 1:stride,
                            dw:dw + stride * (ow - 1) + 1:stride, :])
    patches = jnp.stack(cols, axis=3)                     # (B, oh, ow, k*k, C)
    return patches.reshape(B, oh, ow, k * k * C), oh, ow


# ------------------------------------------------------------ Pallas kernel 1: fused GEMM
def _gemm_affine_act_kernel(x_ref, w_ref, scale_ref, shift_ref, o_ref, *, act):
    # bf16 x bf16 -> f32 accumulate on the MXU; epilogue stays in f32, single cast at store.
    acc = jnp.dot(x_ref[...], w_ref[...], preferred_element_type=jnp.float32)
    y = acc * scale_ref[...] + shift_ref[...]             # (TM, TN) * (1, TN) + (1, TN)
    if act == "relu":
        y = jnp.maximum(y, 0.0)
    elif act == "tanh":
        y = jnp.tanh(y)
    o_ref[...] = y.astype(o_ref.dtype)


def gemm_affine_act(x, w, scale, shift, act, out_dtype=jnp.float32,
                    tile_m=512, tile_n=256):
    """y = act((x @ w) * scale + shift).

    x: (M, K) float (cast to bf16 here); w: (Kp, Np) bf16, pre-padded at init;
    scale/shift: (1, Np) f32.  Returns (M, Np); caller slices the real N columns.
    """
    M, K = x.shape
    Kp, Np = w.shape

    TM = min(tile_m, _round_up(M, 16))                    # bf16 sublane packing -> mult of 16
    Mp = _round_up(M, TM)
    TN = min(tile_n, Np)
    while Np % TN:                                        # Np is a multiple of 128
        TN -= 128

    xp = x.astype(jnp.bfloat16)
    if (Mp, Kp) != (M, K):
        xp = jnp.pad(xp, ((0, Mp - M), (0, Kp - K)))      # small pad only (rows<TM, K->mult 16)

    flops = 2 * Mp * Kp * Np
    bytes_accessed = Mp * Kp * 2 + Kp * Np * 2 + Mp * Np * jnp.dtype(out_dtype).itemsize

    out = pl.pallas_call(
        functools.partial(_gemm_affine_act_kernel, act=act),
        out_shape=jax.ShapeDtypeStruct((Mp, Np), out_dtype),
        grid=(Mp // TM, Np // TN),
        in_specs=[pl.BlockSpec((TM, Kp), lambda i, j: (i, 0)),
                  pl.BlockSpec((Kp, TN), lambda i, j: (0, j)),
                  pl.BlockSpec((1, TN), lambda i, j: (0, j)),
                  pl.BlockSpec((1, TN), lambda i, j: (0, j))],
        out_specs=pl.BlockSpec((TM, TN), lambda i, j: (i, j)),
        compiler_params=pltpu.CompilerParams(
            dimension_semantics=("parallel", "parallel")),
        cost_estimate=pl.CostEstimate(
            flops=int(flops),
            transcendentals=int(Mp * Np) if act == "tanh" else 0,
            bytes_accessed=int(bytes_accessed)),
    )(xp, w, scale, shift)
    return out[:M]


# ---------------------------------------------- Pallas kernels 2+3: instance segment mean
def _seg_stats_kernel(idx_ref, x_ref, mean_ref, sums, counts):
    """Accumulate per-instance sums/counts over pixel tiles; emit means on the last tile."""
    pt = pl.program_id(1)

    @pl.when(pt == 0)
    def _():
        sums[...] = jnp.zeros_like(sums)
        counts[...] = jnp.zeros_like(counts)

    idx = idx_ref[0]                                      # (TP, 1) int32, -1 = padding
    tp = idx.shape[0]
    ni = sums.shape[1]
    onehot = (idx == jax.lax.broadcasted_iota(jnp.int32, (tp, ni), 1)).astype(jnp.float32)
    x = x_ref[0]                                          # (C, TP) f32
    sums[...] += jnp.dot(x, onehot, preferred_element_type=jnp.float32)
    counts[...] += jnp.sum(onehot, axis=0, keepdims=True)

    @pl.when(pt == pl.num_programs(1) - 1)
    def _():
        mean_ref[0] = sums[...] / jnp.maximum(counts[...], 1.0)


def _seg_broadcast_kernel(idx_ref, mean_ref, o_ref):
    """out[c, p] = means[c, idx[p]] via a lane-dense one-hot matmul."""
    idx = idx_ref[0]                                      # (1, TP) int32
    tp = idx.shape[1]
    means = mean_ref[0]                                   # (C, NI)
    ni = means.shape[1]
    onehot_t = (jax.lax.broadcasted_iota(jnp.int32, (ni, tp), 0) == idx).astype(jnp.float32)
    o_ref[0] = jnp.dot(means, onehot_t, preferred_element_type=jnp.float32)


def instance_mean(outputs_nchw, inst_nchw, max_instances=32):
    """outputs_mean[b,c,h,w] = mean over pixels of batch b sharing inst id with (h,w).

    Instance ids are remapped to dense slots [0, max_instances); #unique ids must be
    <= max_instances.
    """
    B, C, H, W = outputs_nchw.shape
    P = H * W
    NIp = _round_up(max_instances, 128)

    Pp = _round_up(P, 128)
    TP = Pp if Pp <= 512 else 512
    Pp = _round_up(P, TP)
    n_pt = Pp // TP

    x = outputs_nchw.reshape(B, C, P).astype(jnp.float32)
    if Pp != P:
        x = jnp.pad(x, ((0, 0), (0, 0), (0, Pp - P)))

    # Remap arbitrary instance ids to dense indices (plain-JAX glue, tiny).
    inst_flat = inst_nchw.reshape(B, P).astype(jnp.int32)
    uniq = jnp.unique(inst_flat, size=max_instances, fill_value=jnp.iinfo(jnp.int32).max)
    idx = jnp.searchsorted(uniq, inst_flat).astype(jnp.int32)        # (B, P)
    idx = jnp.full((B, Pp), -1, jnp.int32).at[:, :P].set(idx)        # -1 sentinel for padding
    idx_col = idx.reshape(B, Pp, 1)
    idx_row = idx.reshape(B, 1, Pp)

    means = pl.pallas_call(
        _seg_stats_kernel,
        out_shape=jax.ShapeDtypeStruct((B, C, NIp), jnp.float32),
        grid=(B, n_pt),
        in_specs=[pl.BlockSpec((1, TP, 1), lambda b, t: (b, t, 0)),
                  pl.BlockSpec((1, C, TP), lambda b, t: (b, 0, t))],
        out_specs=pl.BlockSpec((1, C, NIp), lambda b, t: (b, 0, 0)),
        scratch_shapes=[pltpu.VMEM((C, NIp), jnp.float32),
                        pltpu.VMEM((1, NIp), jnp.float32)],
        compiler_params=pltpu.CompilerParams(
            dimension_semantics=("parallel", "arbitrary")),
    )(idx_col, x)

    out = pl.pallas_call(
        _seg_broadcast_kernel,
        out_shape=jax.ShapeDtypeStruct((B, C, Pp), jnp.float32),
        grid=(B, n_pt),
        in_specs=[pl.BlockSpec((1, 1, TP), lambda b, t: (b, 0, t)),
                  pl.BlockSpec((1, C, NIp), lambda b, t: (b, 0, 0))],
        out_specs=pl.BlockSpec((1, C, TP), lambda b, t: (b, 0, t)),
        compiler_params=pltpu.CompilerParams(
            dimension_semantics=("parallel", "parallel")),
    )(idx_row, means)
    return out[:, :, :P].reshape(B, C, H, W)


# ---------------------------------------------------------------- weight pre-layout (init)
def _pack_gemm(wmat, scale, shift):
    """Pad/cast a (K, N) GEMM weight + per-N affine once at init (bf16 weights, f32 affine)."""
    K, N = wmat.shape
    Kp, Np = _round_up(K, 16), _round_up(N, 128)
    wp = jnp.zeros((Kp, Np), jnp.bfloat16).at[:K, :N].set(wmat.astype(jnp.bfloat16))
    sp = jnp.zeros((1, Np), jnp.float32).at[0, :N].set(scale)
    bp = jnp.zeros((1, Np), jnp.float32).at[0, :N].set(shift)
    return {"w": wp, "scale": sp, "shift": bp, "n": N}


def _layout_conv(w, scale, shift):
    """torch Conv2d weight (Cout, Cin, kh, kw) -> (kh*kw*Cin, Cout) GEMM matrix."""
    Cout, Cin, kh, kw = w.shape
    wmat = jnp.transpose(w, (2, 3, 1, 0)).reshape(kh * kw * Cin, Cout)
    return _pack_gemm(wmat, scale, shift)


def _layout_convT_subpixel(w, scale, shift):
    """torch ConvTranspose2d weight (Cin, Cout, 3, 3) -> sub-pixel GEMM matrix (4*Cin, 4*Cout).

    Rows: taps (dh, dw) in {0,1}^2 over the input (+1 zero pad bottom/right), channel-minor.
    Cols: output phases (ph, pw) in {0,1}^2, channel-minor.  Contribution of x[m+dh, n+dw]
    to y[2m+ph, 2n+pw] uses W[:, :, ph+1-2dh, pw+1-2dw] (zero when out of kernel range).
    """
    Cin, Cout, kh, kw = w.shape
    assert (kh, kw) == (3, 3)
    wc = jnp.zeros((2, 2, Cin, 2, 2, Cout), jnp.float32)
    for dh in range(2):
        for dw in range(2):
            for ph in range(2):
                for pw in range(2):
                    ki_, kj_ = ph + 1 - 2 * dh, pw + 1 - 2 * dw
                    if 0 <= ki_ < 3 and 0 <= kj_ < 3:
                        wc = wc.at[dh, dw, :, ph, pw, :].set(w[:, :, ki_, kj_])
    wmat = wc.reshape(4 * Cin, 4 * Cout)
    return _pack_gemm(wmat, jnp.tile(scale, 4), jnp.tile(shift, 4))


# ----------------------------------------------------------------------- conv layer glue
def conv2d_block(x, layer, *, k, stride=1, pad=0, pad_mode="constant", act="relu",
                 out_dtype=jnp.bfloat16):
    """x: (B,H,W,Cin) NHWC -> (B,OH,OW,Cout)."""
    B = x.shape[0]
    if pad > 0:
        x = jnp.pad(x, ((0, 0), (pad, pad), (pad, pad), (0, 0)), mode=pad_mode)
    patches, oh, ow = _extract_patches(x, k, stride)
    y = gemm_affine_act(patches.reshape(B * oh * ow, -1),
                        layer["w"], layer["scale"], layer["shift"], act, out_dtype=out_dtype)
    return y[:, :layer["n"]].reshape(B, oh, ow, layer["n"])


def convT2d_block_subpixel(x, layer, *, act="relu", out_dtype=jnp.bfloat16):
    """ConvTranspose2d(k=3, stride=2, pad=1, out_pad=1) via sub-pixel decomposition.

    One dense GEMM at input resolution (K=4*Cin, N=4*Cout) instead of a 3x3 conv over a
    zero-dilated 2x-larger tensor.
    """
    B, H, W, Cin = x.shape
    xp = jnp.pad(x, ((0, 0), (0, 1), (0, 1), (0, 0)))           # taps at m+1 / n+1 read zeros
    patches, oh, ow = _extract_patches(xp, 2, 1)                # oh=H, ow=W, K=4*Cin
    y = gemm_affine_act(patches.reshape(B * H * W, -1),
                        layer["w"], layer["scale"], layer["shift"], act, out_dtype=out_dtype)
    Cout = layer["n"] // 4
    y = y[:, :layer["n"]].reshape(B, H, W, 2, 2, Cout)          # (..., ph, pw, cout)
    y = jnp.transpose(y, (0, 1, 3, 2, 4, 5)).reshape(B, 2 * H, 2 * W, Cout)
    return y


# ------------------------------------------------------------------------ parameter init
def init_params(key, input_nc, feat_num, nef, n_downsampling):
    eps = 1e-5

    def fold_bn(k, cout, with_bn):
        kb, kg, kbe = jax.random.split(k, 3)
        b = 0.1 * jax.random.normal(kb, (cout,), jnp.float32)
        if with_bn:
            gamma = 1.0 + 0.1 * jax.random.normal(kg, (cout,), jnp.float32)
            beta = 0.1 * jax.random.normal(kbe, (cout,), jnp.float32)
            s = gamma / jnp.sqrt(1.0 + eps)      # eval-mode BN: running_mean=0, running_var=1
            return s, s * b + beta
        return jnp.ones((cout,), jnp.float32), b

    def make_conv(k, cout, cin, ksz, with_bn=True):
        kw_, kr = jax.random.split(k)
        w = 0.1 * jax.random.normal(kw_, (cout, cin, ksz, ksz), jnp.float32)
        s, sh = fold_bn(kr, cout, with_bn)
        return _layout_conv(w, s, sh)

    def make_convT(k, cin, cout):
        kw_, kr = jax.random.split(k)
        w = 0.1 * jax.random.normal(kw_, (cin, cout, 3, 3), jnp.float32)
        s, sh = fold_bn(kr, cout, True)
        return _layout_convT_subpixel(w, s, sh)

    keys = jax.random.split(key, 2 + 2 * n_downsampling)
    ki = iter(keys)
    params = {"first": make_conv(next(ki), nef, input_nc, 7), "down": [], "up": []}
    for i in range(n_downsampling):
        mult = 2 ** i
        params["down"].append(make_conv(next(ki), nef * mult * 2, nef * mult, 3))
    for i in range(n_downsampling):
        mult = 2 ** (n_downsampling - i)
        params["up"].append(make_convT(next(ki), nef * mult, nef * mult // 2))
    params["last"] = make_conv(next(ki), feat_num, nef, 7, with_bn=False)
    return params


# ------------------------------------------------------------------------------- forward
def encoder_forward(params, x_nchw, inst_nchw, max_instances=32):
    x = jnp.transpose(x_nchw, (0, 2, 3, 1)).astype(jnp.bfloat16)         # -> NHWC, bf16
    p = params["first"]
    x = conv2d_block(x, p, k=7, stride=1, pad=3, pad_mode="reflect", act="relu")
    for p in params["down"]:
        x = conv2d_block(x, p, k=3, stride=2, pad=1, pad_mode="constant", act="relu")
    for p in params["up"]:
        x = convT2d_block_subpixel(x, p, act="relu")
    p = params["last"]
    x = conv2d_block(x, p, k=7, stride=1, pad=3, pad_mode="reflect", act="tanh",
                     out_dtype=jnp.float32)
    out_nchw = jnp.transpose(x, (0, 3, 1, 2))                            # -> NCHW
    return instance_mean(out_nchw, inst_nchw, max_instances)


if __name__ == "__main__":
    B, input_nc, H, W = 2, 4, 16, 16
    feat_num, nef, n_downsampling = 3, 8, 2

    params = init_params(jax.random.PRNGKey(0), input_nc, feat_num, nef, n_downsampling)
    kx, ki = jax.random.split(jax.random.PRNGKey(1))
    x = jax.random.normal(kx, (B, input_nc, H, W), jnp.float32)
    inst = jax.random.randint(ki, (B, 1, H, W), 0, 4, jnp.int32)          # instance map

    out = encoder_forward(params, x, inst)
    out = jax.block_until_ready(out)
    assert out.shape == (B, feat_num, H, W)
    assert bool(jnp.all(jnp.isfinite(out)))
    print("KERNEL_OK")
</pallas_src>

<mosaic_0001>
module attributes {stable_mosaic.version = 11 : i64} {
  func.func @_gemm_affine_act_kernel(%arg0: i32, %arg1: i32, %arg2: memref<512x208xbf16, #tpu.memory_space<vmem>>, %arg3: memref<208x128xbf16, #tpu.memory_space<vmem>>, %arg4: memref<1x128xf32, #tpu.memory_space<vmem>>, %arg5: memref<1x128xf32, #tpu.memory_space<vmem>>, %arg6: memref<512x128xbf16, #tpu.memory_space<vmem>>) attributes {dimension_semantics = [#tpu.dimension_semantics<parallel>, #tpu.dimension_semantics<parallel>], iteration_bounds = array<i64: 1, 1>, scalar_prefetch = 0 : i64, scratch_operands = 0 : i64, tpu.core_type = #tpu.core_type<tc>, window_params = [{transform_indices = @transform_0, window_bounds = array<i64: 512, 208>}, {transform_indices = @transform_1, window_bounds = array<i64: 208, 128>}, {transform_indices = @transform_2, window_bounds = array<i64: 1, 128>}, {transform_indices = @transform_3, window_bounds = array<i64: 1, 128>}, {transform_indices = @transform_4, window_bounds = array<i64: 512, 128>}]} {
    %c0 = arith.constant 0 : index
    %c0_0 = arith.constant 0 : index
    %0 = vector.load %arg2[%c0, %c0_0] : memref<512x208xbf16, #tpu.memory_space<vmem>>, vector<512x208xbf16>
    %c0_1 = arith.constant 0 : index
    %c0_2 = arith.constant 0 : index
    %1 = vector.load %arg3[%c0_1, %c0_2] : memref<208x128xbf16, #tpu.memory_space<vmem>>, vector<208x128xbf16>
    %cst = arith.constant dense<0.000000e+00> : vector<512x128xf32>
    %2 = tpu.matmul %0, %1, %cst {dimension_numbers = #tpu.dot_dimension_numbers<[1], [0], [0], [1], [0, 0, 1, 1], [], []>} : vector<512x208xbf16>, vector<208x128xbf16>, vector<512x128xf32> -> vector<512x128xf32>
    %c0_3 = arith.constant 0 : index
    %c0_4 = arith.constant 0 : index
    %3 = vector.load %arg4[%c0_3, %c0_4] : memref<1x128xf32, #tpu.memory_space<vmem>>, vector<1x128xf32>
    %4 = vector.broadcast %3 : vector<1x128xf32> to vector<512x128xf32>
    %5 = arith.mulf %2, %4 : vector<512x128xf32>
    %c0_5 = arith.constant 0 : index
    %c0_6 = arith.constant 0 : index
    %6 = vector.load %arg5[%c0_5, %c0_6] : memref<1x128xf32, #tpu.memory_space<vmem>>, vector<1x128xf32>
    %7 = vector.broadcast %6 : vector<1x128xf32> to vector<512x128xf32>
    %8 = arith.addf %5, %7 : vector<512x128xf32>
    %cst_7 = arith.constant 0.000000e+00 : f32
    %9 = vector.broadcast %cst_7 : f32 to vector<512x128xf32>
    %10 = arith.maximumf %8, %9 : vector<512x128xf32>
    %11 = arith.truncf %10 : vector<512x128xf32> to vector<512x128xbf16>
    %c0_8 = arith.constant 0 : index
    %c0_9 = arith.constant 0 : index
    %12 = vector.load %arg6[%c0_8, %c0_9] : memref<512x128xbf16, #tpu.memory_space<vmem>>, vector<512x128xbf16>
    tpu.vector_store %arg6[%c0_8, %c0_9], %11 {strides = array<i32>} : memref<512x128xbf16, #tpu.memory_space<vmem>>, vector<512x128xbf16>,
    return
  }
  func.func @transform_0(%arg0: i32, %arg1: i32) -> (i32, i32) {
    %c0_i32 = arith.constant 0 : i32
    %c0_i32_0 = arith.constant 0 : i32
    return %arg0, %c0_i32 : i32, i32
  }
  func.func @transform_1(%arg0: i32, %arg1: i32) -> (i32, i32) {
    %c0_i32 = arith.constant 0 : i32
    %c0_i32_0 = arith.constant 0 : i32
    return %c0_i32, %arg1 : i32, i32
  }
  func.func @transform_2(%arg0: i32, %arg1: i32) -> (i32, i32) {
    %c0_i32 = arith.constant 0 : i32
    %c0_i32_0 = arith.constant 0 : i32
    return %c0_i32, %arg1 : i32, i32
  }
  func.func @transform_3(%arg0: i32, %arg1: i32) -> (i32, i32) {
    %c0_i32 = arith.constant 0 : i32
    %c0_i32_0 = arith.constant 0 : i32
    return %c0_i32, %arg1 : i32, i32
  }
  func.func @transform_4(%arg0: i32, %arg1: i32) -> (i32, i32) {
    %c0_i32 = arith.constant 0 : i32
    return %arg0, %arg1 : i32, i32
  }
}

</mosaic_0001>

<llo_original>
// kernel: tpu_custom_call.1
$region0: #{tpu_custom_call.1}
  #allocation0 [shape = 'u32[]', space=smem, size = 0x4, offset = 0x4, fixed_abs, tag = 'smem constant byte address 0x4 - core index']
  #allocation1 [shape = 'u32[72,128]{1,0:T(1,128)}', space=vmem, size = 0x9000, scoped, tag = 'internal scratch']
  %s0 = inlined_call_operand.vmem [shape: bf16[512,208], index: 0, kind: input, shape index: {}]
  %s1 = inlined_call_operand.vmem [shape: bf16[208,128], index: 1, kind: input, shape index: {}]
  %s2 = inlined_call_operand.vmem [shape: f32[1,128], index: 2, kind: input, shape index: {}]
  %s3 = inlined_call_operand.vmem [shape: f32[1,128], index: 3, kind: input, shape index: {}]
  %s4 = inlined_call_operand.hbm [shape: bf16[512,128], index: 4, kind: output, shape index: {}]
  %s5 = sld [smem:[#allocation0]]
  $region26: #{tpu_custom_call.1} parent=0
    _
  %s7 = ssub.s32 1, %s5
  %s8 = scalar_select 0, %s7, %s5
  $region1: #{tpu_custom_call.1} parent=0
    #allocation2 [shape = 'u8[131072]{0}', space=vmem, size = 0x20000, scoped, tag = 'output window, operand 0, single buffered']
    #allocation3 [shape = 's32[1]{0}', space=sflag, size = 0x4, scoped, tag = 'scoped memory for tpu_custom_call.1']
    %9 = vsyncpa [#allocation3], 0
    // Predicated region
    $region2: #{tpu_custom_call.1} parent=1 // pred_check
      _
    $region3: #{tpu_custom_call.1} parent=1 // pred_check_branch
      %11 = sbr.rel (0) target = $region5
    $region4: #{tpu_custom_call.1} parent=1 // pred_region
      _
    $region5: #{tpu_custom_call.1} parent=1 // pred_fallthru
      _
    // Predicated region
    $region6: #{tpu_custom_call.1} parent=1 // pred_check
      _
    $region7: #{tpu_custom_call.1} parent=1 // pred_check_branch
      %13 = sbr.rel (0) target = $region9
    $region8: #{tpu_custom_call.1} parent=1 // pred_region
      _
    $region9: #{tpu_custom_call.1} parent=1 // pred_fallthru
      _
    // Predicated region
    $region10: #{tpu_custom_call.1} parent=1 // pred_check
      _
    $region11: #{tpu_custom_call.1} parent=1 // pred_check_branch
      %15 = sbr.rel (0) target = $region13
    $region12: #{tpu_custom_call.1} parent=1 // pred_region
      _
    $region13: #{tpu_custom_call.1} parent=1 // pred_fallthru
      _
    // Predicated region
    $region14: #{tpu_custom_call.1} parent=1 // pred_check
      _
    $region15: #{tpu_custom_call.1} parent=1 // pred_check_branch
      %17 = sbr.rel (0) target = $region17
    $region16: #{tpu_custom_call.1} parent=1 // pred_region
      _
    $region17: #{tpu_custom_call.1} parent=1 // pred_fallthru
      _
    %v19 = vld [vmem:[%s0] sm:$0xff]
    %v20 = vld [vmem:[%s0 + $0x8] sm:$0xff]
    %v21 = vld [vmem:[%s0 + $0x10] sm:$0xff]
    %v22 = vld [vmem:[%s0 + $0x18] sm:$0xff]
    %v23 = vld [vmem:[%s0 + $0x20] sm:$0xff]
    %v24 = vld [vmem:[%s0 + $0x28] sm:$0xff]
    %v25 = vld [vmem:[%s0 + $0x30] sm:$0xff]
    %v26 = vld [vmem:[%s0 + $0x38] sm:$0xff]
    %v27 = vld [vmem:[%s0 + $0x40] sm:$0xff]
    %v28 = vld [vmem:[%s0 + $0x48] sm:$0xff]
    %v29 = vld [vmem:[%s0 + $0x50] sm:$0xff]
    %v30 = vld [vmem:[%s0 + $0x58] sm:$0xff]
    %v31 = vld [vmem:[%s0 + $0x60] sm:$0xff]
    %v32 = vld [vmem:[%s0 + $0x68] sm:$0xff]
    %v33 = vld [vmem:[%s0 + $0x70] sm:$0xff]
    %v34 = vld [vmem:[%s0 + $0x78] sm:$0xff]
    %v35 = vld [vmem:[%s0 + $0x80] sm:$0xff]
    %v36 = vld [vmem:[%s0 + $0x88] sm:$0xff]
    %v37 = vld [vmem:[%s0 + $0x90] sm:$0xff]
    %v38 = vld [vmem:[%s0 + $0x98] sm:$0xff]
    %v39 = vld [vmem:[%s0 + $0xa0] sm:$0xff]
    %v40 = vld [vmem:[%s0 + $0xa8] sm:$0xff]
    %v41 = vld [vmem:[%s0 + $0xb0] sm:$0xff]
    %v42 = vld [vmem:[%s0 + $0xb8] sm:$0xff]
    %v43 = vld [vmem:[%s0 + $0xc0] sm:$0xff]
    %v44 = vld [vmem:[%s0 + $0xc8] sm:$0xff]
    %v45 = vld [vmem:[%s0 + $0xd0] sm:$0xff]
    %v46 = vld [vmem:[%s0 + $0xd8] sm:$0xff]
    %v47 = vld [vmem:[%s0 + $0xe0] sm:$0xff]
    %v48 = vld [vmem:[%s0 + $0xe8] sm:$0xff]
    %v49 = vld [vmem:[%s0 + $0xf0] sm:$0xff]
    %v50 = vld [vmem:[%s0 + $0xf8] sm:$0xff]
    %v51 = vld [vmem:[%s0 + $0x100] sm:$0xff]
    %v52 = vld [vmem:[%s0 + $0x108] sm:$0xff]
    %v53 = vld [vmem:[%s0 + $0x110] sm:$0xff]
    %v54 = vld [vmem:[%s0 + $0x118] sm:$0xff]
    %v55 = vld [vmem:[%s0 + $0x120] sm:$0xff]
    %v56 = vld [vmem:[%s0 + $0x128] sm:$0xff]
    %v57 = vld [vmem:[%s0 + $0x130] sm:$0xff]
    %v58 = vld [vmem:[%s0 + $0x138] sm:$0xff]
    %v59 = vld [vmem:[%s0 + $0x140] sm:$0xff]
    %v60 = vld [vmem:[%s0 + $0x148] sm:$0xff]
    %v61 = vld [vmem:[%s0 + $0x150] sm:$0xff]
    %v62 = vld [vmem:[%s0 + $0x158] sm:$0xff]
    %v63 = vld [vmem:[%s0 + $0x160] sm:$0xff]
    %v64 = vld [vmem:[%s0 + $0x168] sm:$0xff]
    %v65 = vld [vmem:[%s0 + $0x170] sm:$0xff]
    %v66 = vld [vmem:[%s0 + $0x178] sm:$0xff]
    %v67 = vld [vmem:[%s0 + $0x180] sm:$0xff]
    %v68 = vld [vmem:[%s0 + $0x188] sm:$0xff]
    %v69 = vld [vmem:[%s0 + $0x190] sm:$0xff]
    %v70 = vld [vmem:[%s0 + $0x198] sm:$0xff]
    %v71 = vld [vmem:[%s0 + $0x1a0] sm:$0xff]
    %v72 = vld [vmem:[%s0 + $0x1a8] sm:$0xff]
    %v73 = vld [vmem:[%s0 + $0x1b0] sm:$0xff]
    %v74 = vld [vmem:[%s0 + $0x1b8] sm:$0xff]
    %v75 = vld [vmem:[%s0 + $0x1c0] sm:$0xff]
    %v76 = vld [vmem:[%s0 + $0x1c8] sm:$0xff]
    %v77 = vld [vmem:[%s0 + $0x1d0] sm:$0xff]
    %v78 = vld [vmem:[%s0 + $0x1d8] sm:$0xff]
    %v79 = vld [vmem:[%s0 + $0x1e0] sm:$0xff]
    %v80 = vld [vmem:[%s0 + $0x1e8] sm:$0xff]
    %v81 = vld [vmem:[%s0 + $0x1f0] sm:$0xff]
    %v82 = vld [vmem:[%s0 + $0x1f8] sm:$0xff]
    %v83 = vld [vmem:[%s1] sm:$0xf]
    %v84 = vld [vmem:[%s1 + $0x4] sm:$0xf]
    %v85 = vld [vmem:[%s1 + $0x8] sm:$0xf]
    %v86 = vld [vmem:[%s1 + $0xc] sm:$0xf]
    %v87 = vld [vmem:[%s1 + $0x10] sm:$0xf]
    %v88 = vld [vmem:[%s1 + $0x14] sm:$0xf]
    %v89 = vld [vmem:[%s1 + $0x18] sm:$0xf]
    %v90 = vld [vmem:[%s1 + $0x1c] sm:$0xf]
    %v91 = vld [vmem:[%s1 + $0x20] sm:$0xf]
    %v92 = vld [vmem:[%s1 + $0x24] sm:$0xf]
    %v93 = vld [vmem:[%s1 + $0x28] sm:$0xf]
    %v94 = vld [vmem:[%s1 + $0x2c] sm:$0xf]
    %v95 = vld [vmem:[%s1 + $0x30] sm:$0xf]
    %v96 = vld [vmem:[%s1 + $0x34] sm:$0xf]
    %v97 = vld [vmem:[%s1 + $0x38] sm:$0xf]
    %v98 = vld [vmem:[%s1 + $0x3c] sm:$0xf]
    %v99 = vld [vmem:[%s1 + $0x40] sm:$0xf]
    %v100 = vld [vmem:[%s1 + $0x44] sm:$0xf]
    %v101 = vld [vmem:[%s1 + $0x48] sm:$0xf]
    %v102 = vld [vmem:[%s1 + $0x4c] sm:$0xf]
    %v103 = vld [vmem:[%s1 + $0x50] sm:$0xf]
    %v104 = vld [vmem:[%s1 + $0x54] sm:$0xf]
    %v105 = vld [vmem:[%s1 + $0x58] sm:$0xf]
    %v106 = vld [vmem:[%s1 + $0x5c] sm:$0xf]
    %v107 = vld [vmem:[%s1 + $0x60] sm:$0xf]
    %v108 = vld [vmem:[%s1 + $0x64] sm:$0xf]
    %v173 = vunpack.c.l.b16 %v19
    %v174 = vunpack.c.h.b16 %v19
    %v175 = vunpack.c.l.b16 %v20
    %v176 = vunpack.c.h.b16 %v20
    %v177 = vunpack.c.l.b16 %v21
    %v178 = vunpack.c.h.b16 %v21
    %v179 = vunpack.c.l.b16 %v22
    %v180 = vunpack.c.h.b16 %v22
    %v181 = vunpack.c.l.b16 %v23
    %v182 = vunpack.c.h.b16 %v23
    %v183 = vunpack.c.l.b16 %v24
    %v184 = vunpack.c.h.b16 %v24
    %v185 = vunpack.c.l.b16 %v25
    %v186 = vunpack.c.h.b16 %v25
    %v187 = vunpack.c.l.b16 %v26
    %v188 = vunpack.c.h.b16 %v26
    %v189 = vunpack.c.l.b16 %v27
    %v190 = vunpack.c.h.b16 %v27
    %v191 = vunpack.c.l.b16 %v28
    %v192 = vunpack.c.h.b16 %v28
    %v193 = vunpack.c.l.b16 %v29
    %v194 = vunpack.c.h.b16 %v29
    %v195 = vunpack.c.l.b16 %v30
    %v196 = vunpack.c.h.b16 %v30
    %v197 = vunpack.c.l.b16 %v31
    %v198 = vunpack.c.h.b16 %v31
    %v199 = vunpack.c.l.b16 %v32
    %v200 = vunpack.c.h.b16 %v32
    %v201 = vunpack.c.l.b16 %v33
    %v202 = vunpack.c.h.b16 %v33
    %v203 = vunpack.c.l.b16 %v34
    %v204 = vunpack.c.h.b16 %v34
    %v205 = vunpack.c.l.b16 %v35
    %v206 = vunpack.c.h.b16 %v35
    %v207 = vunpack.c.l.b16 %v36
    %v208 = vunpack.c.h.b16 %v36
    %v209 = vunpack.c.l.b16 %v37
    %v210 = vunpack.c.h.b16 %v37
    %v211 = vunpack.c.l.b16 %v38
    %v212 = vunpack.c.h.b16 %v38
    %v213 = vunpack.c.l.b16 %v39
    %v214 = vunpack.c.h.b16 %v39
    %v215 = vunpack.c.l.b16 %v40
    %v216 = vunpack.c.h.b16 %v40
    %v217 = vunpack.c.l.b16 %v41
    %v218 = vunpack.c.h.b16 %v41
    %v219 = vunpack.c.l.b16 %v42
    %v220 = vunpack.c.h.b16 %v42
    %v221 = vunpack.c.l.b16 %v43
    %v222 = vunpack.c.h.b16 %v43
    %v223 = vunpack.c.l.b16 %v44
    %v224 = vunpack.c.h.b16 %v44
    %v225 = vunpack.c.l.b16 %v45
    %v226 = vunpack.c.h.b16 %v45
    %v227 = vunpack.c.l.b16 %v46
    %v228 = vunpack.c.h.b16 %v46
    %v229 = vunpack.c.l.b16 %v47
    %v230 = vunpack.c.h.b16 %v47
    %v231 = vunpack.c.l.b16 %v48
    %v232 = vunpack.c.h.b16 %v48
    %v233 = vunpack.c.l.b16 %v49
    %v234 = vunpack.c.h.b16 %v49
    %v235 = vunpack.c.l.b16 %v50
    %v236 = vunpack.c.h.b16 %v50
    %v237 = vunpack.c.l.b16 %v51
    %v238 = vunpack.c.h.b16 %v51
    %v239 = vunpack.c.l.b16 %v52
    %v240 = vunpack.c.h.b16 %v52
    %v241 = vunpack.c.l.b16 %v53
    %v242 = vunpack.c.h.b16 %v53
    %v243 = vunpack.c.l.b16 %v54
    %v244 = vunpack.c.h.b16 %v54
    %v245 = vunpack.c.l.b16 %v55
    %v246 = vunpack.c.h.b16 %v55
    %v247 = vunpack.c.l.b16 %v56
    %v248 = vunpack.c.h.b16 %v56
    %v249 = vunpack.c.l.b16 %v57
    %v250 = vunpack.c.h.b16 %v57
    %v251 = vunpack.c.l.b16 %v58
    %v252 = vunpack.c.h.b16 %v58
    %v253 = vunpack.c.l.b16 %v59
    %v254 = vunpack.c.h.b16 %v59
    %v255 = vunpack.c.l.b16 %v60
    %v256 = vunpack.c.h.b16 %v60
    %v257 = vunpack.c.l.b16 %v61
    %v258 = vunpack.c.h.b16 %v61
    %v259 = vunpack.c.l.b16 %v62
    %v260 = vunpack.c.h.b16 %v62
    %v261 = vunpack.c.l.b16 %v63
    %v262 = vunpack.c.h.b16 %v63
    %v263 = vunpack.c.l.b16 %v64
    %v264 = vunpack.c.h.b16 %v64
    %v265 = vunpack.c.l.b16 %v65
    %v266 = vunpack.c.h.b16 %v65
    %v267 = vunpack.c.l.b16 %v66
    %v268 = vunpack.c.h.b16 %v66
    %v269 = vunpack.c.l.b16 %v67
    %v270 = vunpack.c.h.b16 %v67
    %v271 = vunpack.c.l.b16 %v68
    %v272 = vunpack.c.h.b16 %v68
    %v273 = vunpack.c.l.b16 %v69
    %v274 = vunpack.c.h.b16 %v69
    %v275 = vunpack.c.l.b16 %v70
    %v276 = vunpack.c.h.b16 %v70
    %v277 = vunpack.c.l.b16 %v71
    %v278 = vunpack.c.h.b16 %v71
    %v279 = vunpack.c.l.b16 %v72
    %v280 = vunpack.c.h.b16 %v72
    %v281 = vunpack.c.l.b16 %v73
    %v282 = vunpack.c.h.b16 %v73
    %v283 = vunpack.c.l.b16 %v74
    %v284 = vunpack.c.h.b16 %v74
    %v285 = vunpack.c.l.b16 %v75
    %v286 = vunpack.c.h.b16 %v75
    %v287 = vunpack.c.l.b16 %v76
    %v288 = vunpack.c.h.b16 %v76
    %v289 = vunpack.c.l.b16 %v77
    %v290 = vunpack.c.h.b16 %v77
    %v291 = vunpack.c.l.b16 %v78
    %v292 = vunpack.c.h.b16 %v78
    %v293 = vunpack.c.l.b16 %v79
    %v294 = vunpack.c.h.b16 %v79
    %v295 = vunpack.c.l.b16 %v80
    %v296 = vunpack.c.h.b16 %v80
    %v297 = vunpack.c.l.b16 %v81
    %v298 = vunpack.c.h.b16 %v81
    %v299 = vunpack.c.l.b16 %v82
    %v300 = vunpack.c.h.b16 %v82
    %v301 = vpack.c.b16 %v175, %v173
    %v302 = vpack.c.b16 %v176, %v174
    %v303 = vpack.c.b16 %v179, %v177
    %v304 = vpack.c.b16 %v180, %v178
    %v305 = vpack.c.b16 %v183, %v181
    %v306 = vpack.c.b16 %v184, %v182
    %v307 = vpack.c.b16 %v187, %v185
    %v308 = vpack.c.b16 %v188, %v186
    %v309 = vpack.c.b16 %v191, %v189
    %v310 = vpack.c.b16 %v192, %v190
    %v311 = vpack.c.b16 %v195, %v193
    %v312 = vpack.c.b16 %v196, %v194
    %v313 = vpack.c.b16 %v199, %v197
    %v314 = vpack.c.b16 %v200, %v198
    %v315 = vpack.c.b16 %v203, %v201
    %v316 = vpack.c.b16 %v204, %v202
    %v317 = vpack.c.b16 %v207, %v205
    %v318 = vpack.c.b16 %v208, %v206
    %v319 = vpack.c.b16 %v211, %v209
    %v320 = vpack.c.b16 %v212, %v210
    %v321 = vpack.c.b16 %v215, %v213
    %v322 = vpack.c.b16 %v216, %v214
    %v323 = vpack.c.b16 %v219, %v217
    %v324 = vpack.c.b16 %v220, %v218
    %v325 = vpack.c.b16 %v223, %v221
    %v326 = vpack.c.b16 %v224, %v222
    %v327 = vpack.c.b16 %v227, %v225
    %v328 = vpack.c.b16 %v228, %v226
    %v329 = vpack.c.b16 %v231, %v229
    %v330 = vpack.c.b16 %v232, %v230
    %v331 = vpack.c.b16 %v235, %v233
    %v332 = vpack.c.b16 %v236, %v234
    %v333 = vpack.c.b16 %v239, %v237
    %v334 = vpack.c.b16 %v240, %v238
    %v335 = vpack.c.b16 %v243, %v241
    %v336 = vpack.c.b16 %v244, %v242
    %v337 = vpack.c.b16 %v247, %v245
    %v338 = vpack.c.b16 %v248, %v246
    %v339 = vpack.c.b16 %v251, %v249
    %v340 = vpack.c.b16 %v252, %v250
    %v341 = vpack.c.b16 %v255, %v253
    %v342 = vpack.c.b16 %v256, %v254
    %v343 = vpack.c.b16 %v259, %v257
    %v344 = vpack.c.b16 %v260, %v258
    %v345 = vpack.c.b16 %v263, %v261
    %v346 = vpack.c.b16 %v264, %v262
    %v347 = vpack.c.b16 %v267, %v265
    %v348 = vpack.c.b16 %v268, %v266
    %v349 = vpack.c.b16 %v271, %v269
    %v350 = vpack.c.b16 %v272, %v270
    %v351 = vpack.c.b16 %v275, %v273
    %v352 = vpack.c.b16 %v276, %v274
    %v353 = vpack.c.b16 %v279, %v277
    %v354 = vpack.c.b16 %v280, %v278
    %v355 = vpack.c.b16 %v283, %v281
    %v356 = vpack.c.b16 %v284, %v282
    %v357 = vpack.c.b16 %v287, %v285
    %v358 = vpack.c.b16 %v288, %v286
    %v359 = vpack.c.b16 %v291, %v289
    %v360 = vpack.c.b16 %v292, %v290
    %v361 = vpack.c.b16 %v295, %v293
    %v362 = vpack.c.b16 %v296, %v294
    %v363 = vpack.c.b16 %v299, %v297
    %v364 = vpack.c.b16 %v300, %v298
    %v423 = vunpack.c.l.b16 %v83
    %v424 = vunpack.c.l.b16 %v84
    %v425 = vunpack.c.l.b16 %v85
    %v426 = vunpack.c.l.b16 %v86
    %v427 = vunpack.c.l.b16 %v87
    %v428 = vunpack.c.l.b16 %v88
    %v429 = vunpack.c.l.b16 %v89
    %v430 = vunpack.c.l.b16 %v90
    %v431 = vunpack.c.l.b16 %v91
    %v432 = vunpack.c.l.b16 %v92
    %v433 = vunpack.c.l.b16 %v93
    %v434 = vunpack.c.l.b16 %v94
    %v435 = vunpack.c.l.b16 %v95
    %v436 = vunpack.c.l.b16 %v96
    %v437 = vunpack.c.l.b16 %v97
    %v438 = vunpack.c.l.b16 %v98
    %v439 = vunpack.c.l.b16 %v99
    %v440 = vunpack.c.l.b16 %v100
    %v441 = vunpack.c.l.b16 %v101
    %v442 = vunpack.c.l.b16 %v102
    %v443 = vunpack.c.l.b16 %v103
    %v444 = vunpack.c.l.b16 %v104
    %v445 = vunpack.c.l.b16 %v105
    %v446 = vunpack.c.l.b16 %v106
    %v447 = vunpack.c.l.b16 %v107
    %v448 = vunpack.c.l.b16 %v108
    %v449 = vpack.c.b16 %v424, %v423
    %v450 = vpack.c.b16 %v426, %v425
    %v451 = vpack.c.b16 %v428, %v427
    %v452 = vpack.c.b16 %v430, %v429
    %v453 = vpack.c.b16 %v432, %v431
    %v454 = vpack.c.b16 %v434, %v433
    %v455 = vpack.c.b16 %v436, %v435
    %v456 = vpack.c.b16 %v438, %v437
    %v457 = vpack.c.b16 %v440, %v439
    %v458 = vpack.c.b16 %v442, %v441
    %v459 = vpack.c.b16 %v444, %v443
    %v460 = vpack.c.b16 %v446, %v445
    %v461 = vpack.c.b16 %v448, %v447
    %vm475 = vcmask 654336
    %v477 = vsel %vm475, %v302, 0
    %v480 = vsel %vm475, %v304, 0
    %v483 = vsel %vm475, %v306, 0
    %v486 = vsel %vm475, %v308, 0
    %v489 = vsel %vm475, %v310, 0
    %v492 = vsel %vm475, %v312, 0
    %v495 = vsel %vm475, %v314, 0
    %v498 = vsel %vm475, %v316, 0
    %v501 = vsel %vm475, %v318, 0
    %v504 = vsel %vm475, %v320, 0
    %v507 = vsel %vm475, %v322, 0
    %v510 = vsel %vm475, %v324, 0
    %v513 = vsel %vm475, %v326, 0
    %v516 = vsel %vm475, %v328, 0
    %v519 = vsel %vm475, %v330, 0
    %v522 = vsel %vm475, %v332, 0
    %v525 = vsel %vm475, %v334, 0
    %v528 = vsel %vm475, %v336, 0
    %v531 = vsel %vm475, %v338, 0
    %v534 = vsel %vm475, %v340, 0
    %v537 = vsel %vm475, %v342, 0
    %v540 = vsel %vm475, %v344, 0
    %v543 = vsel %vm475, %v346, 0
    %v546 = vsel %vm475, %v348, 0
    %v549 = vsel %vm475, %v350, 0
    %v552 = vsel %vm475, %v352, 0
    %v555 = vsel %vm475, %v354, 0
    %v558 = vsel %vm475, %v356, 0
    %v561 = vsel %vm475, %v358, 0
    %v564 = vsel %vm475, %v360, 0
    %v567 = vsel %vm475, %v362, 0
    %v570 = vsel %vm475, %v364, 0
    %572 = vmatpush.bf16.msra.mxu0 %v456
    %573 = vmatpush.bf16.msra.mxu0 %v455
    %574 = vmatpush.bf16.msra.mxu0 %v454
    %575 = vmatpush.bf16.msra.mxu0 %v453
    %576 = vmatpush.bf16.msra.mxu0 %v452
    %577 = vmatpush.bf16.msra.mxu0 %v451
    %578 = vmatpush.bf16.msra.mxu0 %v450
    %579 = vmatpush.bf16.msra.mxu0 %v449
    %580 = vmatmul.bf16.gmra.mxu0 %v301
    %v581 = vpop.f32.mrf.mxu0
    %v582 = vadd.f32 0.0, %v581
    %v583 = vpop.f32.mrf.mxu0
    %v584 = vadd.f32 0.0, %v583
    %585 = vmatmul.bf16.gmra.mxu0 %v303
    %v586 = vpop.f32.mrf.mxu0
    %v587 = vadd.f32 0.0, %v586
    %v588 = vpop.f32.mrf.mxu0
    %v589 = vadd.f32 0.0, %v588
    %590 = vmatmul.bf16.gmra.mxu0 %v305
    %v591 = vpop.f32.mrf.mxu0
    %v592 = vadd.f32 0.0, %v591
    %v593 = vpop.f32.mrf.mxu0
    %v594 = vadd.f32 0.0, %v593
    %595 = vmatmul.bf16.gmra.mxu0 %v307
    %v596 = vpop.f32.mrf.mxu0
    %v597 = vadd.f32 0.0, %v596
    %v598 = vpop.f32.mrf.mxu0
    %v599 = vadd.f32 0.0, %v598
    %600 = vmatmul.bf16.gmra.mxu0 %v309
    %v601 = vpop.f32.mrf.mxu0
    %v602 = vadd.f32 0.0, %v601
    %v603 = vpop.f32.mrf.mxu0
    %v604 = vadd.f32 0.0, %v603
    %605 = vmatmul.bf16.gmra.mxu0 %v311
    %v606 = vpop.f32.mrf.mxu0
    %v607 = vadd.f32 0.0, %v606
    %v608 = vpop.f32.mrf.mxu0
    %v609 = vadd.f32 0.0, %v608
    %610 = vmatmul.bf16.gmra.mxu0 %v313
    %v611 = vpop.f32.mrf.mxu0
    %v612 = vadd.f32 0.0, %v611
    %v613 = vpop.f32.mrf.mxu0
    %v614 = vadd.f32 0.0, %v613
    %615 = vmatmul.bf16.gmra.mxu0 %v315
    %v616 = vpop.f32.mrf.mxu0
    %v617 = vadd.f32 0.0, %v616
    %v618 = vpop.f32.mrf.mxu0
    %v619 = vadd.f32 0.0, %v618
    %620 = vmatmul.bf16.gmra.mxu0 %v317
    %v621 = vpop.f32.mrf.mxu0
    %v622 = vadd.f32 0.0, %v621
    %v623 = vpop.f32.mrf.mxu0
    %v624 = vadd.f32 0.0, %v623
    %625 = vmatmul.bf16.gmra.mxu0 %v319
    %v626 = vpop.f32.mrf.mxu0
    %v627 = vadd.f32 0.0, %v626
    %v628 = vpop.f32.mrf.mxu0
    %v629 = vadd.f32 0.0, %v628
    %630 = vmatmul.bf16.gmra.mxu0 %v321
    %v631 = vpop.f32.mrf.mxu0
    %v632 = vadd.f32 0.0, %v631
    %v633 = vpop.f32.mrf.mxu0
    %v634 = vadd.f32 0.0, %v633
    %635 = vmatmul.bf16.gmra.mxu0 %v323
    %v636 = vpop.f32.mrf.mxu0
    %v637 = vadd.f32 0.0, %v636
    %v638 = vpop.f32.mrf.mxu0
    %v639 = vadd.f32 0.0, %v638
    %640 = vmatmul.bf16.gmra.mxu0 %v325
    %v641 = vpop.f32.mrf.mxu0
    %v642 = vadd.f32 0.0, %v641
    %v643 = vpop.f32.mrf.mxu0
    %v644 = vadd.f32 0.0, %v643
    %645 = vmatmul.bf16.gmra.mxu0 %v327
    %v646 = vpop.f32.mrf.mxu0
    %v647 = vadd.f32 0.0, %v646
    %v648 = vpop.f32.mrf.mxu0
    %v649 = vadd.f32 0.0, %v648
    %650 = vmatmul.bf16.gmra.mxu0 %v329
    %v651 = vpop.f32.mrf.mxu0
    %v652 = vadd.f32 0.0, %v651
    %v653 = vpop.f32.mrf.mxu0
    %v654 = vadd.f32 0.0, %v653
    %655 = vmatmul.bf16.gmra.mxu0 %v331
    %v656 = vpop.f32.mrf.mxu0
    %v657 = vadd.f32 0.0, %v656
    %v658 = vpop.f32.mrf.mxu0
    %v659 = vadd.f32 0.0, %v658
    %660 = vmatmul.bf16.gmra.mxu0 %v333
    %v661 = vpop.f32.mrf.mxu0
    %v662 = vadd.f32 0.0, %v661
    %v663 = vpop.f32.mrf.mxu0
    %v664 = vadd.f32 0.0, %v663
    %665 = vmatmul.bf16.gmra.mxu0 %v335
    %v666 = vpop.f32.mrf.mxu0
    %v667 = vadd.f32 0.0, %v666
    %v668 = vpop.f32.mrf.mxu0
    %v669 = vadd.f32 0.0, %v668
    %670 = vmatmul.bf16.gmra.mxu0 %v337
    %v671 = vpop.f32.mrf.mxu0
    %v672 = vadd.f32 0.0, %v671
    %v673 = vpop.f32.mrf.mxu0
    %v674 = vadd.f32 0.0, %v673
    %675 = vmatmul.bf16.gmra.mxu0 %v339
    %v676 = vpop.f32.mrf.mxu0
    %v677 = vadd.f32 0.0, %v676
    %v678 = vpop.f32.mrf.mxu0
    %v679 = vadd.f32 0.0, %v678
    %680 = vmatmul.bf16.gmra.mxu0 %v341
    %v681 = vpop.f32.mrf.mxu0
    %v682 = vadd.f32 0.0, %v681
    %v683 = vpop.f32.mrf.mxu0
    %v684 = vadd.f32 0.0, %v683
    %685 = vmatmul.bf16.gmra.mxu0 %v343
    %v686 = vpop.f32.mrf.mxu0
    %v687 = vadd.f32 0.0, %v686
    %v688 = vpop.f32.mrf.mxu0
    %v689 = vadd.f32 0.0, %v688
    %690 = vmatmul.bf16.gmra.mxu0 %v345
    %v691 = vpop.f32.mrf.mxu0
    %v692 = vadd.f32 0.0, %v691
    %v693 = vpop.f32.mrf.mxu0
    %v694 = vadd.f32 0.0, %v693
    %695 = vmatmul.bf16.gmra.mxu0 %v347
    %v696 = vpop.f32.mrf.mxu0
    %v697 = vadd.f32 0.0, %v696
    %v698 = vpop.f32.mrf.mxu0
    %v699 = vadd.f32 0.0, %v698
    %700 = vmatmul.bf16.gmra.mxu0 %v349
    %v701 = vpop.f32.mrf.mxu0
    %v702 = vadd.f32 0.0, %v701
    %v703 = vpop.f32.mrf.mxu0
    %v704 = vadd.f32 0.0, %v703
    %705 = vmatmul.bf16.gmra.mxu0 %v351
    %v706 = vpop.f32.mrf.mxu0
    %v707 = vadd.f32 0.0, %v706
    %v708 = vpop.f32.mrf.mxu0
    %v709 = vadd.f32 0.0, %v708
    %710 = vmatmul.bf16.gmra.mxu0 %v353
    %v711 = vpop.f32.mrf.mxu0
    %v712 = vadd.f32 0.0, %v711
    %v713 = vpop.f32.mrf.mxu0
    %v714 = vadd.f32 0.0, %v713
    %715 = vmatmul.bf16.gmra.mxu0 %v355
    %v716 = vpop.f32.mrf.mxu0
    %v717 = vadd.f32 0.0, %v716
    %v718 = vpop.f32.mrf.mxu0
    %v719 = vadd.f32 0.0, %v718
    %720 = vmatmul.bf16.gmra.mxu0 %v357
    %v721 = vpop.f32.mrf.mxu0
    %v722 = vadd.f32 0.0, %v721
    %v723 = vpop.f32.mrf.mxu0
    %v724 = vadd.f32 0.0, %v723
    %725 = vmatmul.bf16.gmra.mxu0 %v359
    %v726 = vpop.f32.mrf.mxu0
    %v727 = vadd.f32 0.0, %v726
    %v728 = vpop.f32.mrf.mxu0
    %v729 = vadd.f32 0.0, %v728
    %730 = vmatmul.bf16.gmra.mxu0 %v361
    %v731 = vpop.f32.mrf.mxu0
    %v732 = vadd.f32 0.0, %v731
    %v733 = vpop.f32.mrf.mxu0
    %v734 = vadd.f32 0.0, %v733
    %735 = vmatmul.bf16.gmra.mxu0 %v363
    %v736 = vpop.f32.mrf.mxu0
    %v737 = vadd.f32 0.0, %v736
    %v738 = vpop.f32.mrf.mxu0
    %v739 = vadd.f32 0.0, %v738
    %740 = vdwg.mxu0
    %741 = vmatpush.bf16.msra.mxu0 0
    %742 = vmatpush.bf16.msra.mxu0 0
    %743 = vmatpush.bf16.msra.mxu0 0
    %744 = vmatpush.bf16.msra.mxu0 %v461
    %745 = vmatpush.bf16.msra.mxu0 %v460
    %746 = vmatpush.bf16.msra.mxu0 %v459
    %747 = vmatpush.bf16.msra.mxu0 %v458
    %748 = vmatpush.bf16.msra.mxu0 %v457
    %749 = vmatmul.bf16.gmra.mxu0 %v477
    %v750 = vpop.f32.mrf.mxu0
    %v751 = vadd.f32 %v582, %v750
    %v752 = vpop.f32.mrf.mxu0
    %v753 = vadd.f32 %v584, %v752
    %754 = vmatmul.bf16.gmra.mxu0 %v480
    %v755 = vpop.f32.mrf.mxu0
    %v756 = vadd.f32 %v587, %v755
    %v757 = vpop.f32.mrf.mxu0
    %v758 = vadd.f32 %v589, %v757
    %759 = vmatmul.bf16.gmra.mxu0 %v483
    %v760 = vpop.f32.mrf.mxu0
    %v761 = vadd.f32 %v592, %v760
    %v762 = vpop.f32.mrf.mxu0
    %v763 = vadd.f32 %v594, %v762
    %764 = vmatmul.bf16.gmra.mxu0 %v486
    %v765 = vpop.f32.mrf.mxu0
    %v766 = vadd.f32 %v597, %v765
    %v767 = vpop.f32.mrf.mxu0
    %v768 = vadd.f32 %v599, %v767
    %769 = vmatmul.bf16.gmra.mxu0 %v489
    %v770 = vpop.f32.mrf.mxu0
    %v771 = vadd.f32 %v602, %v770
    %v772 = vpop.f32.mrf.mxu0
    %v773 = vadd.f32 %v604, %v772
    %774 = vmatmul.bf16.gmra.mxu0 %v492
    %v775 = vpop.f32.mrf.mxu0
    %v776 = vadd.f32 %v607, %v775
    %v777 = vpop.f32.mrf.mxu0
    %v778 = vadd.f32 %v609, %v777
    %779 = vmatmul.bf16.gmra.mxu0 %v495
    %v780 = vpop.f32.mrf.mxu0
    %v781 = vadd.f32 %v612, %v780
    %v782 = vpop.f32.mrf.mxu0
    %v783 = vadd.f32 %v614, %v782
    %784 = vmatmul.bf16.gmra.mxu0 %v498
    %v785 = vpop.f32.mrf.mxu0
    %v786 = vadd.f32 %v617, %v785
    %v787 = vpop.f32.mrf.mxu0
    %v788 = vadd.f32 %v619, %v787
    %789 = vmatmul.bf16.gmra.mxu0 %v501
    %v790 = vpop.f32.mrf.mxu0
    %v791 = vadd.f32 %v622, %v790
    %v792 = vpop.f32.mrf.mxu0
    %v793 = vadd.f32 %v624, %v792
    %794 = vmatmul.bf16.gmra.mxu0 %v504
    %v795 = vpop.f32.mrf.mxu0
    %v796 = vadd.f32 %v627, %v795
    %v797 = vpop.f32.mrf.mxu0
    %v798 = vadd.f32 %v629, %v797
    %799 = vmatmul.bf16.gmra.mxu0 %v507
    %v800 = vpop.f32.mrf.mxu0
    %v801 = vadd.f32 %v632, %v800
    %v802 = vpop.f32.mrf.mxu0
    %v803 = vadd.f32 %v634, %v802
    %804 = vmatmul.bf16.gmra.mxu0 %v510
    %v805 = vpop.f32.mrf.mxu0
    %v806 = vadd.f32 %v637, %v805
    %v807 = vpop.f32.mrf.mxu0
    %v808 = vadd.f32 %v639, %v807
    %809 = vmatmul.bf16.gmra.mxu0 %v513
    %v810 = vpop.f32.mrf.mxu0
    %v811 = vadd.f32 %v642, %v810
    %v812 = vpop.f32.mrf.mxu0
    %v813 = vadd.f32 %v644, %v812
    %814 = vmatmul.bf16.gmra.mxu0 %v516
    %v815 = vpop.f32.mrf.mxu0
    %v816 = vadd.f32 %v647, %v815
    %v817 = vpop.f32.mrf.mxu0
    %v818 = vadd.f32 %v649, %v817
    %819 = vmatmul.bf16.gmra.mxu0 %v519
    %v820 = vpop.f32.mrf.mxu0
    %v821 = vadd.f32 %v652, %v820
    %v822 = vpop.f32.mrf.mxu0
    %v823 = vadd.f32 %v654, %v822
    %824 = vmatmul.bf16.gmra.mxu0 %v522
    %v825 = vpop.f32.mrf.mxu0
    %v826 = vadd.f32 %v657, %v825
    %v827 = vpop.f32.mrf.mxu0
    %v828 = vadd.f32 %v659, %v827
    %829 = vmatmul.bf16.gmra.mxu0 %v525
    %v830 = vpop.f32.mrf.mxu0
    %v831 = vadd.f32 %v662, %v830
    %v832 = vpop.f32.mrf.mxu0
    %v833 = vadd.f32 %v664, %v832
    %834 = vmatmul.bf16.gmra.mxu0 %v528
    %v835 = vpop.f32.mrf.mxu0
    %v836 = vadd.f32 %v667, %v835
    %v837 = vpop.f32.mrf.mxu0
    %v838 = vadd.f32 %v669, %v837
    %839 = vmatmul.bf16.gmra.mxu0 %v531
    %v840 = vpop.f32.mrf.mxu0
    %v841 = vadd.f32 %v672, %v840
    %v842 = vpop.f32.mrf.mxu0
    %v843 = vadd.f32 %v674, %v842
    %844 = vmatmul.bf16.gmra.mxu0 %v534
    %v845 = vpop.f32.mrf.mxu0
    %v846 = vadd.f32 %v677, %v845
    %v847 = vpop.f32.mrf.mxu0
    %v848 = vadd.f32 %v679, %v847
    %849 = vmatmul.bf16.gmra.mxu0 %v537
    %v850 = vpop.f32.mrf.mxu0
    %v851 = vadd.f32 %v682, %v850
    %v852 = vpop.f32.mrf.mxu0
    %v853 = vadd.f32 %v684, %v852
    %854 = vmatmul.bf16.gmra.mxu0 %v540
    %v855 = vpop.f32.mrf.mxu0
    %v856 = vadd.f32 %v687, %v855
    %v857 = vpop.f32.mrf.mxu0
    %v858 = vadd.f32 %v689, %v857
    %859 = vmatmul.bf16.gmra.mxu0 %v543
    %v860 = vpop.f32.mrf.mxu0
    %v861 = vadd.f32 %v692, %v860
    %v862 = vpop.f32.mrf.mxu0
    %v863 = vadd.f32 %v694, %v862
    %864 = vmatmul.bf16.gmra.mxu0 %v546
    %v865 = vpop.f32.mrf.mxu0
    %v866 = vadd.f32 %v697, %v865
    %v867 = vpop.f32.mrf.mxu0
    %v868 = vadd.f32 %v699, %v867
    %869 = vmatmul.bf16.gmra.mxu0 %v549
    %v870 = vpop.f32.mrf.mxu0
    %v871 = vadd.f32 %v702, %v870
    %v872 = vpop.f32.mrf.mxu0
    %v873 = vadd.f32 %v704, %v872
    %874 = vmatmul.bf16.gmra.mxu0 %v552
    %v875 = vpop.f32.mrf.mxu0
    %v876 = vadd.f32 %v707, %v875
    %v877 = vpop.f32.mrf.mxu0
    %v878 = vadd.f32 %v709, %v877
    %879 = vmatmul.bf16.gmra.mxu0 %v555
    %v880 = vpop.f32.mrf.mxu0
    %v881 = vadd.f32 %v712, %v880
    %v882 = vpop.f32.mrf.mxu0
    %v883 = vadd.f32 %v714, %v882
    %884 = vmatmul.bf16.gmra.mxu0 %v558
    %v885 = vpop.f32.mrf.mxu0
    %v886 = vadd.f32 %v717, %v885
    %v887 = vpop.f32.mrf.mxu0
    %v888 = vadd.f32 %v719, %v887
    %889 = vmatmul.bf16.gmra.mxu0 %v561
    %v890 = vpop.f32.mrf.mxu0
    %v891 = vadd.f32 %v722, %v890
    %v892 = vpop.f32.mrf.mxu0
    %v893 = vadd.f32 %v724, %v892
    %894 = vmatmul.bf16.gmra.mxu0 %v564
    %v895 = vpop.f32.mrf.mxu0
    %v896 = vadd.f32 %v727, %v895
    %v897 = vpop.f32.mrf.mxu0
    %v898 = vadd.f32 %v729, %v897
    %899 = vmatmul.bf16.gmra.mxu0 %v567
    %v900 = vpop.f32.mrf.mxu0
    %v901 = vadd.f32 %v732, %v900
    %v902 = vpop.f32.mrf.mxu0
    %v903 = vadd.f32 %v734, %v902
    %904 = vmatmul.bf16.gmra.mxu0 %v570
    %v905 = vpop.f32.mrf.mxu0
    %v906 = vadd.f32 %v737, %v905
    %v907 = vpop.f32.mrf.mxu0
    %v908 = vadd.f32 %v739, %v907
    %909 = vdwg.mxu0
    %v910 = vld [vmem:[%s2] sm:$0x1]
    %v912 = vperm.slane %v910, 0
    %v914 = vmul.f32 %v751, %v912
    %v915 = vmul.f32 %v753, %v912
    %v916 = vmul.f32 %v756, %v912
    %v917 = vmul.f32 %v758, %v912
    %v918 = vmul.f32 %v761, %v912
    %v919 = vmul.f32 %v763, %v912
    %v920 = vmul.f32 %v766, %v912
    %v921 = vmul.f32 %v768, %v912
    %v922 = vmul.f32 %v771, %v912
    %v923 = vmul.f32 %v773, %v912
    %v924 = vmul.f32 %v776, %v912
    %v925 = vmul.f32 %v778, %v912
    %v926 = vmul.f32 %v781, %v912
    %v927 = vmul.f32 %v783, %v912
    %v928 = vmul.f32 %v786, %v912
    %v929 = vmul.f32 %v788, %v912
    %v930 = vmul.f32 %v791, %v912
    %v931 = vmul.f32 %v793, %v912
    %v932 = vmul.f32 %v796, %v912
    %v933 = vmul.f32 %v798, %v912
    %v934 = vmul.f32 %v801, %v912
    %v935 = vmul.f32 %v803, %v912
    %v936 = vmul.f32 %v806, %v912
    %v937 = vmul.f32 %v808, %v912
    %v938 = vmul.f32 %v811, %v912
    %v939 = vmul.f32 %v813, %v912
    %v940 = vmul.f32 %v816, %v912
    %v941 = vmul.f32 %v818, %v912
    %v942 = vmul.f32 %v821, %v912
    %v943 = vmul.f32 %v823, %v912
    %v944 = vmul.f32 %v826, %v912
    %v945 = vmul.f32 %v828, %v912
    %v946 = vmul.f32 %v831, %v912
    %v947 = vmul.f32 %v833, %v912
    %v948 = vmul.f32 %v836, %v912
    %v949 = vmul.f32 %v838, %v912
    %v950 = vmul.f32 %v841, %v912
    %v951 = vmul.f32 %v843, %v912
    %v952 = vmul.f32 %v846, %v912
    %v953 = vmul.f32 %v848, %v912
    %v954 = vmul.f32 %v851, %v912
    %v955 = vmul.f32 %v853, %v912
    %v956 = vmul.f32 %v856, %v912
    %v957 = vmul.f32 %v858, %v912
    %v958 = vmul.f32 %v861, %v912
    %v959 = vmul.f32 %v863, %v912
    %v960 = vmul.f32 %v866, %v912
    %v961 = vmul.f32 %v868, %v912
    %v962 = vmul.f32 %v871, %v912
    %v963 = vmul.f32 %v873, %v912
    %v964 = vmul.f32 %v876, %v912
    %v965 = vmul.f32 %v878, %v912
    %v966 = vmul.f32 %v881, %v912
    %v967 = vmul.f32 %v883, %v912
    %v968 = vmul.f32 %v886, %v912
    %v969 = vmul.f32 %v888, %v912
    %v970 = vmul.f32 %v891, %v912
    %v971 = vmul.f32 %v893, %v912
    %v972 = vmul.f32 %v896, %v912
    %v973 = vmul.f32 %v898, %v912
    %v974 = vmul.f32 %v901, %v912
    %v975 = vmul.f32 %v903, %v912
    %v976 = vmul.f32 %v906, %v912
    %v977 = vmul.f32 %v908, %v912
    %v978 = vld [vmem:[%s3] sm:$0x1]
    %v980 = vperm.slane %v978, 0
    %v982 = vadd.f32 %v914, %v980
    %v983 = vadd.f32 %v915, %v980
    %v984 = vadd.f32 %v916, %v980
    %v985 = vadd.f32 %v917, %v980
    %v986 = vadd.f32 %v918, %v980
    %v987 = vadd.f32 %v919, %v980
    %v988 = vadd.f32 %v920, %v980
    %v989 = vadd.f32 %v921, %v980
    %v990 = vadd.f32 %v922, %v980
    %v991 = vadd.f32 %v923, %v980
    %v992 = vadd.f32 %v924, %v980
    %v993 = vadd.f32 %v925, %v980
    %v994 = vadd.f32 %v926, %v980
    %v995 = vadd.f32 %v927, %v980
    %v996 = vadd.f32 %v928, %v980
    %v997 = vadd.f32 %v929, %v980
    %v998 = vadd.f32 %v930, %v980
    %v999 = vadd.f32 %v931, %v980
    %v1000 = vadd.f32 %v932, %v980
    %v1001 = vadd.f32 %v933, %v980
    %v1002 = vadd.f32 %v934, %v980
    %v1003 = vadd.f32 %v935, %v980
    %v1004 = vadd.f32 %v936, %v980
    %v1005 = vadd.f32 %v937, %v980
    %v1006 = vadd.f32 %v938, %v980
    %v1007 = vadd.f32 %v939, %v980
    %v1008 = vadd.f32 %v940, %v980
    %v1009 = vadd.f32 %v941, %v980
    %v1010 = vadd.f32 %v942, %v980
    %v1011 = vadd.f32 %v943, %v980
    %v1012 = vadd.f32 %v944, %v980
    %v1013 = vadd.f32 %v945, %v980
    %v1014 = vadd.f32 %v946, %v980
    %v1015 = vadd.f32 %v947, %v980
    %v1016 = vadd.f32 %v948, %v980
    %v1017 = vadd.f32 %v949, %v980
    %v1018 = vadd.f32 %v950, %v980
    %v1019 = vadd.f32 %v951, %v980
    %v1020 = vadd.f32 %v952, %v980
    %v1021 = vadd.f32 %v953, %v980
    %v1022 = vadd.f32 %v954, %v980
    %v1023 = vadd.f32 %v955, %v980
    %v1024 = vadd.f32 %v956, %v980
    %v1025 = vadd.f32 %v957, %v980
    %v1026 = vadd.f32 %v958, %v980
    %v1027 = vadd.f32 %v959, %v980
    %v1028 = vadd.f32 %v960, %v980
    %v1029 = vadd.f32 %v961, %v980
    %v1030 = vadd.f32 %v962, %v980
    %v1031 = vadd.f32 %v963, %v980
    %v1032 = vadd.f32 %v964, %v980
    %v1033 = vadd.f32 %v965, %v980
    %v1034 = vadd.f32 %v966, %v980
    %v1035 = vadd.f32 %v967, %v980
    %v1036 = vadd.f32 %v968, %v980
    %v1037 = vadd.f32 %v969, %v980
    %v1038 = vadd.f32 %v970, %v980
    %v1039 = vadd.f32 %v971, %v980
    %v1040 = vadd.f32 %v972, %v980
    %v1041 = vadd.f32 %v973, %v980
    %v1042 = vadd.f32 %v974, %v980
    %v1043 = vadd.f32 %v975, %v980
    %v1044 = vadd.f32 %v976, %v980
    %v1045 = vadd.f32 %v977, %v980
    %v1046 = vmax.f32 %v982, 0.0
    %v1047 = vmax.f32 %v983, 0.0
    %v1048 = vmax.f32 %v984, 0.0
    %v1049 = vmax.f32 %v985, 0.0
    %v1050 = vmax.f32 %v986, 0.0
    %v1051 = vmax.f32 %v987, 0.0
    %v1052 = vmax.f32 %v988, 0.0
    %v1053 = vmax.f32 %v989, 0.0
    %v1054 = vmax.f32 %v990, 0.0
    %v1055 = vmax.f32 %v991, 0.0
    %v1056 = vmax.f32 %v992, 0.0
    %v1057 = vmax.f32 %v993, 0.0
    %v1058 = vmax.f32 %v994, 0.0
    %v1059 = vmax.f32 %v995, 0.0
    %v1060 = vmax.f32 %v996, 0.0
    %v1061 = vmax.f32 %v997, 0.0
    %v1062 = vmax.f32 %v998, 0.0
    %v1063 = vmax.f32 %v999, 0.0
    %v1064 = vmax.f32 %v1000, 0.0
    %v1065 = vmax.f32 %v1001, 0.0
    %v1066 = vmax.f32 %v1002, 0.0
    %v1067 = vmax.f32 %v1003, 0.0
    %v1068 = vmax.f32 %v1004, 0.0
    %v1069 = vmax.f32 %v1005, 0.0
    %v1070 = vmax.f32 %v1006, 0.0
    %v1071 = vmax.f32 %v1007, 0.0
    %v1072 = vmax.f32 %v1008, 0.0
    %v1073 = vmax.f32 %v1009, 0.0
    %v1074 = vmax.f32 %v1010, 0.0
    %v1075 = vmax.f32 %v1011, 0.0
    %v1076 = vmax.f32 %v1012, 0.0
    %v1077 = vmax.f32 %v1013, 0.0
    %v1078 = vmax.f32 %v1014, 0.0
    %v1079 = vmax.f32 %v1015, 0.0
    %v1080 = vmax.f32 %v1016, 0.0
    %v1081 = vmax.f32 %v1017, 0.0
    %v1082 = vmax.f32 %v1018, 0.0
    %v1083 = vmax.f32 %v1019, 0.0
    %v1084 = vmax.f32 %v1020, 0.0
    %v1085 = vmax.f32 %v1021, 0.0
    %v1086 = vmax.f32 %v1022, 0.0
    %v1087 = vmax.f32 %v1023, 0.0
    %v1088 = vmax.f32 %v1024, 0.0
    %v1089 = vmax.f32 %v1025, 0.0
    %v1090 = vmax.f32 %v1026, 0.0
    %v1091 = vmax.f32 %v1027, 0.0
    %v1092 = vmax.f32 %v1028, 0.0
    %v1093 = vmax.f32 %v1029, 0.0
    %v1094 = vmax.f32 %v1030, 0.0
    %v1095 = vmax.f32 %v1031, 0.0
    %v1096 = vmax.f32 %v1032, 0.0
    %v1097 = vmax.f32 %v1033, 0.0
    %v1098 = vmax.f32 %v1034, 0.0
    %v1099 = vmax.f32 %v1035, 0.0
    %v1100 = vmax.f32 %v1036, 0.0
    %v1101 = vmax.f32 %v1037, 0.0
    %v1102 = vmax.f32 %v1038, 0.0
    %v1103 = vmax.f32 %v1039, 0.0
    %v1104 = vmax.f32 %v1040, 0.0
    %v1105 = vmax.f32 %v1041, 0.0
    %v1106 = vmax.f32 %v1042, 0.0
    %v1107 = vmax.f32 %v1043, 0.0
    %v1108 = vmax.f32 %v1044, 0.0
    %v1109 = vmax.f32 %v1045, 0.0
    %v1110 = vpack.c.bf16 %v1046, %v1046
    %v1111 = vpack.c.bf16 %v1047, %v1047
    %v1112 = vpack.c.bf16 %v1048, %v1048
    %v1113 = vpack.c.bf16 %v1049, %v1049
    %v1114 = vpack.c.bf16 %v1050, %v1050
    %v1115 = vpack.c.bf16 %v1051, %v1051
    %v1116 = vpack.c.bf16 %v1052, %v1052
    %v1117 = vpack.c.bf16 %v1053, %v1053
    %v1118 = vpack.c.bf16 %v1054, %v1054
    %v1119 = vpack.c.bf16 %v1055, %v1055
    %v1120 = vpack.c.bf16 %v1056, %v1056
    %v1121 = vpack.c.bf16 %v1057, %v1057
    %v1122 = vpack.c.bf16 %v1058, %v1058
    %v1123 = vpack.c.bf16 %v1059, %v1059
    %v1124 = vpack.c.bf16 %v1060, %v1060
    %v1125 = vpack.c.bf16 %v1061, %v1061
    %v1126 = vpack.c.bf16 %v1062, %v1062
    %v1127 = vpack.c.bf16 %v1063, %v1063
    %v1128 = vpack.c.bf16 %v1064, %v1064
    %v1129 = vpack.c.bf16 %v1065, %v1065
    %v1130 = vpack.c.bf16 %v1066, %v1066
    %v1131 = vpack.c.bf16 %v1067, %v1067
    %v1132 = vpack.c.bf16 %v1068, %v1068
    %v1133 = vpack.c.bf16 %v1069, %v1069
    %v1134 = vpack.c.bf16 %v1070, %v1070
    %v1135 = vpack.c.bf16 %v1071, %v1071
    %v1136 = vpack.c.bf16 %v1072, %v1072
    %v1137 = vpack.c.bf16 %v1073, %v1073
    %v1138 = vpack.c.bf16 %v1074, %v1074
    %v1139 = vpack.c.bf16 %v1075, %v1075
    %v1140 = vpack.c.bf16 %v1076, %v1076
    %v1141 = vpack.c.bf16 %v1077, %v1077
    %v1142 = vpack.c.bf16 %v1078, %v1078
    %v1143 = vpack.c.bf16 %v1079, %v1079
    %v1144 = vpack.c.bf16 %v1080, %v1080
    %v1145 = vpack.c.bf16 %v1081, %v1081
    %v1146 = vpack.c.bf16 %v1082, %v1082
    %v1147 = vpack.c.bf16 %v1083, %v1083
    %v1148 = vpack.c.bf16 %v1084, %v1084
    %v1149 = vpack.c.bf16 %v1085, %v1085
    %v1150 = vpack.c.bf16 %v1086, %v1086
    %v1151 = vpack.c.bf16 %v1087, %v1087
    %v1152 = vpack.c.bf16 %v1088, %v1088
    %v1153 = vpack.c.bf16 %v1089, %v1089
    %v1154 = vpack.c.bf16 %v1090, %v1090
    %v1155 = vpack.c.bf16 %v1091, %v1091
    %v1156 = vpack.c.bf16 %v1092, %v1092
    %v1157 = vpack.c.bf16 %v1093, %v1093
    %v1158 = vpack.c.bf16 %v1094, %v1094
    %v1159 = vpack.c.bf16 %v1095, %v1095
    %v1160 = vpack.c.bf16 %v1096, %v1096
    %v1161 = vpack.c.bf16 %v1097, %v1097
    %v1162 = vpack.c.bf16 %v1098, %v1098
    %v1163 = vpack.c.bf16 %v1099, %v1099
    %v1164 = vpack.c.bf16 %v1100, %v1100
    %v1165 = vpack.c.bf16 %v1101, %v1101
    %v1166 = vpack.c.bf16 %v1102, %v1102
    %v1167 = vpack.c.bf16 %v1103, %v1103
    %v1168 = vpack.c.bf16 %v1104, %v1104
    %v1169 = vpack.c.bf16 %v1105, %v1105
    %v1170 = vpack.c.bf16 %v1106, %v1106
    %v1171 = vpack.c.bf16 %v1107, %v1107
    %v1172 = vpack.c.bf16 %v1108, %v1108
    %v1173 = vpack.c.bf16 %v1109, %v1109
    %1174 = vst [vmem:[#allocation2] sm:$0xf] %v1110
    %1175 = vst [vmem:[#allocation2 + $0x4] sm:$0xf] %v1111
    %1176 = vst [vmem:[#allocation2 + $0x8] sm:$0xf] %v1112
    %1177 = vst [vmem:[#allocation2 + $0xc] sm:$0xf] %v1113
    %1178 = vst [vmem:[#allocation2 + $0x10] sm:$0xf] %v1114
    %1179 = vst [vmem:[#allocation2 + $0x14] sm:$0xf] %v1115
    %1180 = vst [vmem:[#allocation2 + $0x18] sm:$0xf] %v1116
    %1181 = vst [vmem:[#allocation2 + $0x1c] sm:$0xf] %v1117
    %1182 = vst [vmem:[#allocation2 + $0x20] sm:$0xf] %v1118
    %1183 = vst [vmem:[#allocation2 + $0x24] sm:$0xf] %v1119
    %1184 = vst [vmem:[#allocation2 + $0x28] sm:$0xf] %v1120
    %1185 = vst [vmem:[#allocation2 + $0x2c] sm:$0xf] %v1121
    %1186 = vst [vmem:[#allocation2 + $0x30] sm:$0xf] %v1122
    %1187 = vst [vmem:[#allocation2 + $0x34] sm:$0xf] %v1123
    %1188 = vst [vmem:[#allocation2 + $0x38] sm:$0xf] %v1124
    %1189 = vst [vmem:[#allocation2 + $0x3c] sm:$0xf] %v1125
    %1190 = vst [vmem:[#allocation2 + $0x40] sm:$0xf] %v1126
    %1191 = vst [vmem:[#allocation2 + $0x44] sm:$0xf] %v1127
    %1192 = vst [vmem:[#allocation2 + $0x48] sm:$0xf] %v1128
    %1193 = vst [vmem:[#allocation2 + $0x4c] sm:$0xf] %v1129
    %1194 = vst [vmem:[#allocation2 + $0x50] sm:$0xf] %v1130
    %1195 = vst [vmem:[#allocation2 + $0x54] sm:$0xf] %v1131
    %1196 = vst [vmem:[#allocation2 + $0x58] sm:$0xf] %v1132
    %1197 = vst [vmem:[#allocation2 + $0x5c] sm:$0xf] %v1133
    %1198 = vst [vmem:[#allocation2 + $0x60] sm:$0xf] %v1134
    %1199 = vst [vmem:[#allocation2 + $0x64] sm:$0xf] %v1135
    %1200 = vst [vmem:[#allocation2 + $0x68] sm:$0xf] %v1136
    %1201 = vst [vmem:[#allocation2 + $0x6c] sm:$0xf] %v1137
    %1202 = vst [vmem:[#allocation2 + $0x70] sm:$0xf] %v1138
    %1203 = vst [vmem:[#allocation2 + $0x74] sm:$0xf] %v1139
    %1204 = vst [vmem:[#allocation2 + $0x78] sm:$0xf] %v1140
    %1205 = vst [vmem:[#allocation2 + $0x7c] sm:$0xf] %v1141
    %1206 = vst [vmem:[#allocation2 + $0x80] sm:$0xf] %v1142
    %1207 = vst [vmem:[#allocation2 + $0x84] sm:$0xf] %v1143
    %1208 = vst [vmem:[#allocation2 + $0x88] sm:$0xf] %v1144
    %1209 = vst [vmem:[#allocation2 + $0x8c] sm:$0xf] %v1145
    %1210 = vst [vmem:[#allocation2 + $0x90] sm:$0xf] %v1146
    %1211 = vst [vmem:[#allocation2 + $0x94] sm:$0xf] %v1147
    %1212 = vst [vmem:[#allocation2 + $0x98] sm:$0xf] %v1148
    %1213 = vst [vmem:[#allocation2 + $0x9c] sm:$0xf] %v1149
    %1214 = vst [vmem:[#allocation2 + $0xa0] sm:$0xf] %v1150
    %1215 = vst [vmem:[#allocation2 + $0xa4] sm:$0xf] %v1151
    %1216 = vst [vmem:[#allocation2 + $0xa8] sm:$0xf] %v1152
    %1217 = vst [vmem:[#allocation2 + $0xac] sm:$0xf] %v1153
    %1218 = vst [vmem:[#allocation2 + $0xb0] sm:$0xf] %v1154
    %1219 = vst [vmem:[#allocation2 + $0xb4] sm:$0xf] %v1155
    %1220 = vst [vmem:[#allocation2 + $0xb8] sm:$0xf] %v1156
    %1221 = vst [vmem:[#allocation2 + $0xbc] sm:$0xf] %v1157
    %1222 = vst [vmem:[#allocation2 + $0xc0] sm:$0xf] %v1158
    %1223 = vst [vmem:[#allocation2 + $0xc4] sm:$0xf] %v1159
    %1224 = vst [vmem:[#allocation2 + $0xc8] sm:$0xf] %v1160
    %1225 = vst [vmem:[#allocation2 + $0xcc] sm:$0xf] %v1161
    %1226 = vst [vmem:[#allocation2 + $0xd0] sm:$0xf] %v1162
    %1227 = vst [vmem:[#allocation2 + $0xd4] sm:$0xf] %v1163
    %1228 = vst [vmem:[#allocation2 + $0xd8] sm:$0xf] %v1164
    %1229 = vst [vmem:[#allocation2 + $0xdc] sm:$0xf] %v1165
    %1230 = vst [vmem:[#allocation2 + $0xe0] sm:$0xf] %v1166
    %1231 = vst [vmem:[#allocation2 + $0xe4] sm:$0xf] %v1167
    %1232 = vst [vmem:[#allocation2 + $0xe8] sm:$0xf] %v1168
    %1233 = vst [vmem:[#allocation2 + $0xec] sm:$0xf] %v1169
    %1234 = vst [vmem:[#allocation2 + $0xf0] sm:$0xf] %v1170
    %1235 = vst [vmem:[#allocation2 + $0xf4] sm:$0xf] %v1171
    %1236 = vst [vmem:[#allocation2 + $0xf8] sm:$0xf] %v1172
    %1237 = vst [vmem:[#allocation2 + $0xfc] sm:$0xf] %v1173
    // Predicated region
    $region18: #{tpu_custom_call.1} parent=1 // pred_check
      _
    $region19: #{tpu_custom_call.1} parent=1 // pred_check_branch
      %1239 = sbr.rel (0) target = $region21
    $region20: #{tpu_custom_call.1} parent=1 // pred_region
      %1241 = vsyncadd [#allocation3], 0
      %s1242 = sshll.u32 [#allocation2], 4
      %s1243 = int_to_ptr.vmem [resolvable:$true] %s1242
      %s1244 = sshll.u32 %s4, 4
      %s1245 = int_to_ptr.hbm [resolvable:$true] %s1244
      %1250 = dma.vmem_to_hbm [thread:$0]  %s1243, 4096, %s1245, [#allocation3], 64, 64, 4
    $region21: #{tpu_custom_call.1} parent=1 // pred_fallthru
      _
    // Predicated region
    $region22: #{tpu_custom_call.1} parent=1 // pred_check
      _
    $region23: #{tpu_custom_call.1} parent=1 // pred_check_branch
      %1252 = sbr.rel (0) target = $region25
    $region24: #{tpu_custom_call.1} parent=1 // pred_region
      %1254 = dma.done [#allocation3], 4096
    $region25: #{tpu_custom_call.1} parent=1 // pred_fallthru
      _
    %1255 = vsyncpa [#allocation3], 1

</llo_original>
